<compile_context>
chip_gen: v6e
topology: v6e:2x2x1
jax: 0.10.0
libtpu: 0.0.40
codegen_flags: <defaults>
</compile_context>

<pallas_src>
import functools

import jax
import jax.numpy as jnp
from jax.experimental import pallas as pl
from jax.experimental.pallas import tpu as pltpu

_LANE_TILE_MAX = 65536        # 3-vectors per grid step (~1.5 MiB useful/step)
_FAST_PATH_BYTES = 256 * 1024  # below this, pure-JAX (XLA-fused) wins


def _cube_kernel(pred_ref, tgt_ref, out_ref, *, n_valid, lane_tile, inv_n):
    # pred_ref / tgt_ref: (3, lane_tile) SoA block (x/y/z component planes).
    i = pl.program_id(0)
    n_steps = pl.num_programs(0)

    @pl.when(i == 0)
    def _init():
        out_ref[...] = jnp.zeros_like(out_ref)

    d = pred_ref[...].astype(jnp.float32) - tgt_ref[...].astype(jnp.float32)
    sq = jnp.sum(d * d, axis=0, keepdims=True)            # (1, lane_tile)

    if n_valid % lane_tile != 0:
        # Partial last block: mask out-of-bounds tail lanes BEFORE the sqrt.
        lane = jax.lax.broadcasted_iota(jnp.int32, sq.shape, dimension=1)
        valid = (i * lane_tile + lane) < n_valid
        sq = jnp.where(valid, sq, 0.0)

    dist = jnp.sqrt(sq)                                    # EUP, (1, lane_tile)
    out_ref[...] += jnp.sum(dist, keepdims=True)           # (1, 1) partial sum

    @pl.when(i == n_steps - 1)
    def _finalize():
        out_ref[...] = out_ref[...] * inv_n


def cube_loss(pred, target, *, lane_tile=None,
              min_pallas_bytes=_FAST_PATH_BYTES):
    """Pallas equivalent of CubeLoss().forward(pred, target)."""
    assert pred.shape == target.shape and pred.ndim == 3 and pred.shape[-1] == 3
    B, K, C = pred.shape
    N = B * K

    total_bytes = 2 * pred.size * pred.dtype.itemsize
    if total_bytes < min_pallas_bytes:
        # Small-problem fast path: XLA fuses the whole thing into one kernel.
        return cube_loss_ref(pred, target)

    # SoA planes (3, N): lane-dense last dim. reshape is free; the transpose
    # is one HBM pass done once in the wrapper.
    x = jnp.transpose(pred.reshape(N, C))     # (3, N)
    t = jnp.transpose(target.reshape(N, C))   # (3, N)

    if lane_tile is None:
        lane_tile = _LANE_TILE_MAX
    if N <= lane_tile:
        lane_tile = N                          # whole-array block (always legal)
    else:
        lane_tile = max((lane_tile // 128) * 128, 128)   # block lane dim % 128
    steps = pl.cdiv(N, lane_tile)

    kernel = functools.partial(_cube_kernel, n_valid=N, lane_tile=lane_tile,
                               inv_n=1.0 / N)

    out = pl.pallas_call(
        kernel,
        out_shape=jax.ShapeDtypeStruct((1, 1), jnp.float32),
        grid_spec=pltpu.PrefetchScalarGridSpec(
            num_scalar_prefetch=0,
            grid=(steps,),
            in_specs=[
                pl.BlockSpec((C, lane_tile), lambda i: (0, i)),
                pl.BlockSpec((C, lane_tile), lambda i: (0, i)),
            ],
            # Constant index_map -> output block is VMEM-resident accumulator.
            out_specs=pl.BlockSpec((1, 1), lambda i: (0, 0)),
        ),
        compiler_params=pltpu.CompilerParams(
            dimension_semantics=("arbitrary",),   # sequential accumulation
            vmem_limit_bytes=32 * 1024 * 1024,
        ),
    )(x, t)

    return out[0, 0]


def cube_loss_ref(pred, target):
    """Pure-JAX reference mirroring the PyTorch module."""
    cha = pred.astype(jnp.float32) - target.astype(jnp.float32)
    he = jnp.sum(cha * cha, axis=2)
    return jnp.mean(jnp.sqrt(he))


if __name__ == "__main__":
    key = jax.random.PRNGKey(0)
    k1, k2 = jax.random.split(key)

    # Small shape implied by the module: (batch, 32, 3).
    B = 2
    pred = jax.random.normal(k1, (B, 32, 3), dtype=jnp.float32)
    target = jax.random.normal(k2, (B, 32, 3), dtype=jnp.float32)

    # Force the Pallas path (default config would take the small-problem
    # fast path for this size).
    out = jax.block_until_ready(cube_loss(pred, target, min_pallas_bytes=0))
    ref = cube_loss_ref(pred, target)
    assert jnp.allclose(out, ref, rtol=1e-5, atol=1e-6), (float(out), float(ref))

    # Exercise the multi-step grid + partial-last-block masking path
    # (N = 640 lanes, lane_tile = 256 -> 3 steps, 128-lane tail).
    B2 = 20
    p2 = jax.random.normal(k1, (B2, 32, 3), dtype=jnp.float32)
    t2 = jax.random.normal(k2, (B2, 32, 3), dtype=jnp.float32)
    out2 = jax.block_until_ready(
        cube_loss(p2, t2, lane_tile=256, min_pallas_bytes=0))
    ref2 = cube_loss_ref(p2, t2)
    assert jnp.allclose(out2, ref2, rtol=1e-5, atol=1e-6), (float(out2), float(ref2))

    # Default entry point (small-problem fast path) agrees as well.
    out3 = jax.block_until_ready(cube_loss(pred, target))
    assert jnp.allclose(out3, ref, rtol=1e-5, atol=1e-6)

    print("KERNEL_OK")
</pallas_src>

<mosaic_0001>
module attributes {stable_mosaic.version = 11 : i64} {
  func.func @_cube_kernel(%arg0: i32, %arg1: memref<3x64xf32, #tpu.memory_space<vmem>>, %arg2: memref<3x64xf32, #tpu.memory_space<vmem>>, %arg3: memref<1x1xf32, #tpu.memory_space<vmem>>) attributes {dimension_semantics = [#tpu.dimension_semantics<arbitrary>], iteration_bounds = array<i64: 1>, scalar_prefetch = 0 : i64, scratch_operands = 0 : i64, tpu.core_type = #tpu.core_type<tc>, window_params = [{transform_indices = @transform_0, window_bounds = array<i64: 3, 64>}, {transform_indices = @transform_1, window_bounds = array<i64: 3, 64>}, {pipeline_mode = #tpu.pipeline_mode<synchronous>, transform_indices = @transform_2, window_bounds = array<i64: 1, 1>}]} {
    %c0_i32 = arith.constant 0 : i32
    %0 = arith.cmpi eq, %arg0, %c0_i32 : i32
    %1 = arith.extui %0 : i1 to i32
    %c0_i32_0 = arith.constant 0 : i32
    %2 = arith.cmpi ne, %1, %c0_i32_0 : i32
    scf.if %2 {
      %cst_11 = arith.constant 0.000000e+00 : f32
      %21 = vector.broadcast %cst_11 : f32 to vector<1x1xf32>
      %c0_12 = arith.constant 0 : index
      %c0_13 = arith.constant 0 : index
      %22 = vector.load %arg3[%c0_12, %c0_13] : memref<1x1xf32, #tpu.memory_space<vmem>>, vector<1x1xf32>
      tpu.vector_store %arg3[%c0_12, %c0_13], %21 {strides = array<i32>} : memref<1x1xf32, #tpu.memory_space<vmem>>, vector<1x1xf32>,
    } else {
    }
    %c0 = arith.constant 0 : index
    %c0_1 = arith.constant 0 : index
    %3 = vector.load %arg1[%c0, %c0_1] : memref<3x64xf32, #tpu.memory_space<vmem>>, vector<3x64xf32>
    %c0_2 = arith.constant 0 : index
    %c0_3 = arith.constant 0 : index
    %4 = vector.load %arg2[%c0_2, %c0_3] : memref<3x64xf32, #tpu.memory_space<vmem>>, vector<3x64xf32>
    %5 = arith.subf %3, %4 : vector<3x64xf32>
    %6 = arith.mulf %5, %5 : vector<3x64xf32>
    %cst = arith.constant dense<0.000000e+00> : vector<64xf32>
    %7 = vector.multi_reduction <add>, %6, %cst [0] : vector<3x64xf32> to vector<64xf32>
    %8 = vector.shape_cast %7 : vector<64xf32> to vector<1x64xf32>
    %9 = math.sqrt %8 : vector<1x64xf32>
    %c0_4 = arith.constant 0 : index
    %c0_5 = arith.constant 0 : index
    %10 = vector.load %arg3[%c0_4, %c0_5] : memref<1x1xf32, #tpu.memory_space<vmem>>, vector<1x1xf32>
    %11 = vector.shape_cast %9 : vector<1x64xf32> to vector<1x1x64xf32>
    %cst_6 = arith.constant dense<0.000000e+00> : vector<1xf32>
    %12 = vector.multi_reduction <add>, %11, %cst_6 [1, 2] : vector<1x1x64xf32> to vector<1xf32>
    %13 = vector.shape_cast %12 : vector<1xf32> to vector<1x1x1xf32>
    %14 = vector.extract %13[0, 0, 0] : f32 from vector<1x1x1xf32>
    %15 = vector.broadcast %14 : f32 to vector<1x1xf32>
    %16 = arith.addf %10, %15 : vector<1x1xf32>
    %c0_7 = arith.constant 0 : index
    %c0_8 = arith.constant 0 : index
    %17 = vector.load %arg3[%c0_7, %c0_8] : memref<1x1xf32, #tpu.memory_space<vmem>>, vector<1x1xf32>
    tpu.vector_store %arg3[%c0_7, %c0_8], %16 {strides = array<i32>} : memref<1x1xf32, #tpu.memory_space<vmem>>, vector<1x1xf32>,
    %c0_i32_9 = arith.constant 0 : i32
    %18 = arith.cmpi eq, %arg0, %c0_i32_9 : i32
    %19 = arith.extui %18 : i1 to i32
    %c0_i32_10 = arith.constant 0 : i32
    %20 = arith.cmpi ne, %19, %c0_i32_10 : i32
    scf.if %20 {
      %c0_11 = arith.constant 0 : index
      %c0_12 = arith.constant 0 : index
      %21 = vector.load %arg3[%c0_11, %c0_12] : memref<1x1xf32, #tpu.memory_space<vmem>>, vector<1x1xf32>
      %cst_13 = arith.constant 1.562500e-02 : f32
      %22 = vector.broadcast %cst_13 : f32 to vector<1x1xf32>
      %23 = arith.mulf %21, %22 : vector<1x1xf32>
      %c0_14 = arith.constant 0 : index
      %c0_15 = arith.constant 0 : index
      %24 = vector.load %arg3[%c0_14, %c0_15] : memref<1x1xf32, #tpu.memory_space<vmem>>, vector<1x1xf32>
      tpu.vector_store %arg3[%c0_14, %c0_15], %23 {strides = array<i32>} : memref<1x1xf32, #tpu.memory_space<vmem>>, vector<1x1xf32>,
    } else {
    }
    return
  }
  func.func @transform_0(%arg0: i32) -> (i32, i32) {
    %c0_i32 = arith.constant 0 : i32
    %c0_i32_0 = arith.constant 0 : i32
    return %c0_i32, %arg0 : i32, i32
  }
  func.func @transform_1(%arg0: i32) -> (i32, i32) {
    %c0_i32 = arith.constant 0 : i32
    %c0_i32_0 = arith.constant 0 : i32
    return %c0_i32, %arg0 : i32, i32
  }
  func.func @transform_2(%arg0: i32) -> (i32, i32) {
    %c0_i32 = arith.constant 0 : i32
    %c0_i32_0 = arith.constant 0 : i32
    %c0_i32_1 = arith.constant 0 : i32
    return %c0_i32, %c0_i32_0 : i32, i32
  }
}

</mosaic_0001>

<llo_original>
// kernel: tpu_custom_call.1
$region0: #{tpu_custom_call.1}
  #allocation0 [shape = 'u32[]', space=smem, size = 0x4, offset = 0x4, fixed_abs, tag = 'smem constant byte address 0x4 - core index']
  #allocation1 [shape = 'u32[144,128]{1,0:T(1,128)}', space=vmem, size = 0x12000, scoped, tag = 'internal scratch']
  %s0 = inlined_call_operand.hbm [shape: f32[3,64], index: 0, kind: input, shape index: {}]
  %s1 = inlined_call_operand.hbm [shape: f32[3,64], index: 1, kind: input, shape index: {}]
  %s2 = inlined_call_operand.hbm [shape: f32[1,1], index: 2, kind: output, shape index: {}]
  %s3 = sld [smem:[#allocation0]]
  $region34: #{tpu_custom_call.1} parent=0
    _
  %s5 = ssub.s32 1, %s3
  %s6 = scalar_select 0, %s5, %s3
  $region1: #{tpu_custom_call.1} parent=0
    #allocation2 [shape = 'u8[2048]{0}', space=vmem, size = 0x800, scoped, tag = 'input window, operand 0, single buffered']
    #allocation3 [shape = 's32[1]{0}', space=sflag, size = 0x4, scoped, tag = 'scoped memory for tpu_custom_call.1']
    #allocation4 [shape = 's32[1]{0}', space=sflag, size = 0x4, scoped, tag = 'scoped memory for tpu_custom_call.1']
    #allocation5 [shape = 'u8[2048]{0}', space=vmem, size = 0x800, scoped, tag = 'input window, operand 1, single buffered']
    #allocation6 [shape = 's32[1]{0}', space=sflag, size = 0x4, scoped, tag = 'scoped memory for tpu_custom_call.1']
    #allocation7 [shape = 'u8[512]{0}', space=vmem, size = 0x400, scoped, tag = 'output window, operand 0, single buffered']
    %7 = vsyncpa [#allocation3], 0
    %8 = vsyncpa [#allocation6], 0
    %9 = vsyncpa [#allocation4], 0
    // Predicated region
    $region2: #{tpu_custom_call.1} parent=1 // pred_check
      _
    $region3: #{tpu_custom_call.1} parent=1 // pred_check_branch
      %11 = sbr.rel (0) target = $region5
    $region4: #{tpu_custom_call.1} parent=1 // pred_region
      %s13 = ssub.s32 64, 64
      %14 = vsyncadd [#allocation3], %s13
      %s16 = sshll.u32 [#allocation2], 4
      %s17 = int_to_ptr.vmem [resolvable:$true] %s16
      %19 = dma.hbm_to_vmem [thread:$0]  %s0, 64, %s17, [#allocation3]
    $region5: #{tpu_custom_call.1} parent=1 // pred_fallthru
      _
    // Predicated region
    $region6: #{tpu_custom_call.1} parent=1 // pred_check
      _
    $region7: #{tpu_custom_call.1} parent=1 // pred_check_branch
      %21 = sbr.rel (0) target = $region9
    $region8: #{tpu_custom_call.1} parent=1 // pred_region
      %s23 = ssub.s32 64, 64
      %24 = vsyncadd [#allocation6], %s23
      %s26 = sshll.u32 [#allocation5], 4
      %s27 = int_to_ptr.vmem [resolvable:$true] %s26
      %29 = dma.hbm_to_vmem [thread:$0]  %s1, 64, %s27, [#allocation6]
    $region9: #{tpu_custom_call.1} parent=1 // pred_fallthru
      _
    // Predicated region
    $region10: #{tpu_custom_call.1} parent=1 // pred_check
      _
    $region11: #{tpu_custom_call.1} parent=1 // pred_check_branch
      %31 = sbr.rel (0) target = $region13
    $region12: #{tpu_custom_call.1} parent=1 // pred_region
      %32 = dma.done [#allocation3], 64
    $region13: #{tpu_custom_call.1} parent=1 // pred_fallthru
      _
    // Predicated region
    $region14: #{tpu_custom_call.1} parent=1 // pred_check
      _
    $region15: #{tpu_custom_call.1} parent=1 // pred_check_branch
      %34 = sbr.rel (0) target = $region17
    $region16: #{tpu_custom_call.1} parent=1 // pred_region
      %35 = dma.done [#allocation6], 64
    $region17: #{tpu_custom_call.1} parent=1 // pred_fallthru
      _
    %p36 = scmp.eq.s32.totalorder 0, 0
    // Predicated region
    $region18: #{tpu_custom_call.1} parent=1 // pred_check
      %p37 = pneg %p36
    $region19: #{tpu_custom_call.1} parent=1 // pred_check_branch
      %39 = sbr.rel (%p37) target = $region21
    $region20: #{tpu_custom_call.1} parent=1 // pred_region
      %vm40 = vcmask 0
      %41 = vst.msk [vmem:[#allocation7] sm:$0x1] %vm40, 0.0
    $region21: #{tpu_custom_call.1} parent=1 // pred_fallthru
      _
    %v42 = vld [vmem:[#allocation2] sm:$0x7]
    %v43 = vld [vmem:[#allocation5] sm:$0x7]
    %v44 = vsub.f32 %v42, %v43
    %v45 = vmul.f32 %v44, %v44
    %vm46 = vcmask 518144
    %v47 = vsel %vm46, %v45, 0.0
    %v48 = vrot.slane %v47, 4
    %v49 = vadd.f32 %v47, %v48
    %v50 = vrot.slane %v49, 2
    %v51 = vadd.f32 %v49, %v50
    %v52 = vrot.slane %v51, 1
    %v53 = vadd.f32 %v51, %v52
    %v54 = vrsqrt.pop %v53
    %v55 = vmul.f32 %v53, %v54
    %vm56 = vcmp.eq.f32.partialorder %v53, inf
    %v57 = vsel %vm56, %v53, %v55
    %vm58 = vcmp.eq.f32.partialorder %v53, 0.0
    %v59 = vand.u32 %v53, 2147483648
    %v60 = vsel %vm58, %v59, %v57
    %v61 = vld [vmem:[#allocation7] sm:$0x1]
    %vm62 = vcmask 516096
    %v63 = vsel %vm62, %v60, 0.0
    %64 = vadd.xlane.f32.xlu0 %v63
    %v65 = vpop.xlane.xlu0 %64
    %v66 = vrot.slane %v65, 4
    %v67 = vadd.f32 %v65, %v66
    %v68 = vrot.slane %v67, 2
    %v69 = vadd.f32 %v67, %v68
    %v70 = vrot.slane %v69, 1
    %v71 = vadd.f32 %v69, %v70
    %s72 = vtos %v71
    %v73 = vstv %s72
    %v74 = vadd.f32 %v61, %v73
    %vm75 = vcmask 0
    %76 = vst.msk [vmem:[#allocation7] sm:$0x1] %vm75, %v74
    // Predicated region
    $region22: #{tpu_custom_call.1} parent=1 // pred_check
      %p77 = pneg %p36
    $region23: #{tpu_custom_call.1} parent=1 // pred_check_branch
      %79 = sbr.rel (%p77) target = $region25
    $region24: #{tpu_custom_call.1} parent=1 // pred_region
      %v80 = vld [vmem:[#allocation7] sm:$0x1]
      %v81 = vmul.f32 %v80, 0.015625
      %82 = vst.msk [vmem:[#allocation7] sm:$0x1] %vm75, %v81
    $region25: #{tpu_custom_call.1} parent=1 // pred_fallthru
      _
    // Predicated region
    $region26: #{tpu_custom_call.1} parent=1 // pred_check
      _
    $region27: #{tpu_custom_call.1} parent=1 // pred_check_branch
      %84 = sbr.rel (0) target = $region29
    $region28: #{tpu_custom_call.1} parent=1 // pred_region
      %s86 = ssub.s32 16, 16
      %87 = vsyncadd [#allocation4], %s86
      %s89 = sshll.u32 [#allocation7], 4
      %s90 = int_to_ptr.vmem [resolvable:$true] %s89
      %92 = dma.vmem_to_hbm [thread:$0]  %s90, 16, %s2, [#allocation4]
    $region29: #{tpu_custom_call.1} parent=1 // pred_fallthru
      _
    // Predicated region
    $region30: #{tpu_custom_call.1} parent=1 // pred_check
      _
    $region31: #{tpu_custom_call.1} parent=1 // pred_check_branch
      %94 = sbr.rel (0) target = $region33
    $region32: #{tpu_custom_call.1} parent=1 // pred_region
      %95 = dma.done [#allocation4], 16
    $region33: #{tpu_custom_call.1} parent=1 // pred_fallthru
      _
    %96 = vsyncpa [#allocation3], 1
    %97 = vsyncpa [#allocation6], 1
    %98 = vsyncpa [#allocation4], 1

</llo_original>
